<compile_context>
chip_gen: v5e
topology: v5e:2x2
jax: 0.10.0
libtpu: 0.0.40
codegen_flags: <defaults>
</compile_context>

<pallas_src>
import functools

import jax
import jax.numpy as jnp
from jax.experimental import pallas as pl
from jax.experimental.pallas import tpu as pltpu

P_DROP = 0.4
EPS = 1e-5
IN_FEATURES = 48 * 4 * 4     # 768 (already a multiple of 128)
HID = 100
OUT = 10
HID_PAD = 128
OUT_PAD = 128
# keep iff bits >= threshold  =>  P(keep) = 1 - P_DROP
_DROP_THRESHOLD = int(P_DROP * (1 << 32))


def _tinyh_kernel(*refs, use_dropout: bool):
    if use_dropout:
        (x_ref, bits0_ref, bits1_ref, bits2_ref,
         w1_ref, g1_ref, be1_ref,
         w2_ref, g2_ref, be2_ref,
         w3_ref, b3_ref, o_ref) = refs
    else:
        (x_ref,
         w1_ref, g1_ref, be1_ref,
         w2_ref, g2_ref, be2_ref,
         w3_ref, b3_ref, o_ref) = refs
        bits0_ref = bits1_ref = bits2_ref = None

    def dropout(h, bits_ref):
        if not use_dropout:
            return h
        # Integer-threshold mask; the 1/(1-p) scale is pre-folded into weights.
        keep = bits_ref[...] >= jnp.uint32(_DROP_THRESHOLD)
        return jnp.where(keep, h, 0.0)

    def batchnorm(h, gamma, beta):
        # Training-mode BN (batch stats, biased variance), fused scale/shift.
        mean = jnp.mean(h, axis=0, keepdims=True)
        var = jnp.maximum(jnp.mean(h * h, axis=0, keepdims=True) - mean * mean, 0.0)
        s = gamma * jax.lax.rsqrt(var + EPS)      # rsqrt -> EUP slot (free)
        t = beta - mean * s
        return h * s + t

    x = dropout(x_ref[...], bits0_ref)

    # fc1 (bias dropped: cancelled by BN mean subtraction)
    h1 = jnp.dot(x.astype(jnp.bfloat16), w1_ref[...],
                 preferred_element_type=jnp.float32)
    h1 = jnp.maximum(batchnorm(h1, g1_ref[...], be1_ref[...]), 0.0)
    h1 = dropout(h1, bits1_ref)

    # fc2 (bias dropped: cancelled by BN mean subtraction)
    h2 = jnp.dot(h1.astype(jnp.bfloat16), w2_ref[...],
                 preferred_element_type=jnp.float32)
    h2 = jnp.maximum(batchnorm(h2, g2_ref[...], be2_ref[...]), 0.0)
    h2 = dropout(h2, bits2_ref)

    # fc3 (no BN follows it in the torch forward, so its bias is kept)
    o_ref[...] = (jnp.dot(h2.astype(jnp.bfloat16), w3_ref[...],
                          preferred_element_type=jnp.float32)
                  + b3_ref[...])


def init_params(key):
    """Torch-layout params matching TinyH._initialize_weights:
    Linear weight ~ N(0, 0.01) shaped [out, in], bias = 0; BN weight=1, bias=0."""
    k1, k2, k3 = jax.random.split(key, 3)
    f32 = jnp.float32
    return {
        "fc1_w": 0.01 * jax.random.normal(k1, (HID, IN_FEATURES), f32),
        "fc1_b": jnp.zeros((HID,), f32),
        "bn1_g": jnp.ones((HID,), f32),
        "bn1_b": jnp.zeros((HID,), f32),
        "fc2_w": 0.01 * jax.random.normal(k2, (HID, HID), f32),
        "fc2_b": jnp.zeros((HID,), f32),
        "bn2_g": jnp.ones((HID,), f32),
        "bn2_b": jnp.zeros((HID,), f32),
        "fc3_w": 0.01 * jax.random.normal(k3, (OUT, HID), f32),
        "fc3_b": jnp.zeros((OUT,), f32),
    }


def _pad_row(v, n):
    return jnp.pad(v, (0, n - v.shape[0])).reshape(1, n)


def prepare_params(params, dropout=True):
    """One-time prep: transpose to [in, out], zero-pad lanes to 128, fold the
    inverted-dropout scale 1/(1-p) into the weights, cast matmul weights to bf16."""
    scale = (1.0 / (1.0 - P_DROP)) if dropout else 1.0
    w1 = jnp.pad(params["fc1_w"].T, ((0, 0), (0, HID_PAD - HID))) * scale
    w2 = jnp.pad(params["fc2_w"].T,
                 ((0, HID_PAD - HID), (0, HID_PAD - HID))) * scale
    w3 = jnp.pad(params["fc3_w"].T,
                 ((0, HID_PAD - HID), (0, OUT_PAD - OUT))) * scale
    return {
        "w1": w1.astype(jnp.bfloat16),                 # [768, 128]
        "g1": _pad_row(params["bn1_g"], HID_PAD),      # [1, 128]
        "be1": _pad_row(params["bn1_b"], HID_PAD),
        "w2": w2.astype(jnp.bfloat16),                 # [128, 128]
        "g2": _pad_row(params["bn2_g"], HID_PAD),
        "be2": _pad_row(params["bn2_b"], HID_PAD),
        "w3": w3.astype(jnp.bfloat16),                 # [128, 128]
        "b3": _pad_row(params["fc3_b"], OUT_PAD),      # [1, 128]
        # fc1_b / fc2_b intentionally dropped: no-ops under training-mode BN.
    }


def _forward_padded(x, kparams, key, dropout):
    B = x.shape[0]
    vmem = pl.BlockSpec(memory_space=pltpu.MemorySpace.VMEM)

    weight_args = (kparams["w1"], kparams["g1"], kparams["be1"],
                   kparams["w2"], kparams["g2"], kparams["be2"],
                   kparams["w3"], kparams["b3"])

    if dropout:
        k0, k1, k2 = jax.random.split(key, 3)
        bits = (jax.random.bits(k0, (B, IN_FEATURES), jnp.uint32),
                jax.random.bits(k1, (B, HID_PAD), jnp.uint32),
                jax.random.bits(k2, (B, HID_PAD), jnp.uint32))
        args = (x,) + bits + weight_args
    else:
        args = (x,) + weight_args

    out_padded = pl.pallas_call(
        functools.partial(_tinyh_kernel, use_dropout=dropout),
        out_shape=jax.ShapeDtypeStruct((B, OUT_PAD), jnp.float32),
        in_specs=[vmem] * len(args),
        out_specs=vmem,
    )(*args)
    return out_padded[:, :OUT]


@functools.partial(jax.jit, static_argnames=("dropout",))
def tinyh_forward(x, kparams, key, dropout=True):
    """x: [B, 768] float32 -> [B, 10] float32 logits (single fused XLA program)."""
    return _forward_padded(x, kparams, key, dropout)


def _reference_forward(x, params):
    """Pure-JAX f32 reference of TinyH.forward(x, dropout=False) with the torch
    module in train mode (BN on batch statistics, biased variance)."""
    hp = jax.lax.Precision.HIGHEST

    def bn(h, g, b):
        mean = jnp.mean(h, axis=0, keepdims=True)
        var = jnp.mean((h - mean) ** 2, axis=0, keepdims=True)
        return (h - mean) * jax.lax.rsqrt(var + EPS) * g + b

    h1 = jnp.dot(x, params["fc1_w"].T, precision=hp) + params["fc1_b"]
    h1 = jax.nn.relu(bn(h1, params["bn1_g"], params["bn1_b"]))
    h2 = jnp.dot(h1, params["fc2_w"].T, precision=hp) + params["fc2_b"]
    h2 = jax.nn.relu(bn(h2, params["bn2_g"], params["bn2_b"]))
    return jnp.dot(h2, params["fc3_w"].T, precision=hp) + params["fc3_b"]


if __name__ == "__main__":
    root = jax.random.PRNGKey(0)
    pkey, xkey, dkey = jax.random.split(root, 3)

    params = init_params(pkey)
    B = 8
    x = jax.random.normal(xkey, (B, IN_FEATURES), jnp.float32)

    # Training-style forward (dropout active, BN on batch statistics).
    kparams_train = prepare_params(params, dropout=True)
    out = tinyh_forward(x, kparams_train, dkey, dropout=True)
    out = jax.block_until_ready(out)
    assert out.shape == (B, OUT) and out.dtype == jnp.float32
    assert bool(jnp.all(jnp.isfinite(out)))

    # dropout=False path (identity dropout; BN still on batch stats, as in the
    # torch module which stays in .train() mode).  Deterministic, so validate
    # against the pure-JAX f32 reference.
    kparams_eval = prepare_params(params, dropout=False)
    out_eval = tinyh_forward(x, kparams_eval, dkey, dropout=False)
    out_eval = jax.block_until_ready(out_eval)
    assert out_eval.shape == (B, OUT) and bool(jnp.all(jnp.isfinite(out_eval)))

    ref = _reference_forward(x, params)
    max_err = float(jnp.max(jnp.abs(out_eval - ref)))
    assert max_err < 2e-2, f"eval-path mismatch vs f32 reference: {max_err}"

    print("KERNEL_OK")
</pallas_src>

<mosaic_0001>
module attributes {stable_mosaic.version = 11 : i64} {
  func.func @_tinyh_kernel(%arg0: memref<8x768xf32, #tpu.memory_space<vmem>>, %arg1: memref<8x768xi32, #tpu.memory_space<vmem>>, %arg2: memref<8x128xi32, #tpu.memory_space<vmem>>, %arg3: memref<8x128xi32, #tpu.memory_space<vmem>>, %arg4: memref<768x128xbf16, #tpu.memory_space<vmem>>, %arg5: memref<1x128xf32, #tpu.memory_space<vmem>>, %arg6: memref<1x128xf32, #tpu.memory_space<vmem>>, %arg7: memref<128x128xbf16, #tpu.memory_space<vmem>>, %arg8: memref<1x128xf32, #tpu.memory_space<vmem>>, %arg9: memref<1x128xf32, #tpu.memory_space<vmem>>, %arg10: memref<128x128xbf16, #tpu.memory_space<vmem>>, %arg11: memref<1x128xf32, #tpu.memory_space<vmem>>, %arg12: memref<8x128xf32, #tpu.memory_space<vmem>>) attributes {dimension_semantics = [], scalar_prefetch = 0 : i64, scratch_operands = 0 : i64, tpu.core_type = #tpu.core_type<tc>} {
    %c0 = arith.constant 0 : index
    %c0_0 = arith.constant 0 : index
    %0 = vector.load %arg0[%c0, %c0_0] : memref<8x768xf32, #tpu.memory_space<vmem>>, vector<8x768xf32>
    %c0_1 = arith.constant 0 : index
    %c0_2 = arith.constant 0 : index
    %1 = vector.load %arg1[%c0_1, %c0_2] : memref<8x768xi32, #tpu.memory_space<vmem>>, vector<8x768xi32>
    %c1717986918_i32 = arith.constant 1717986918 : i32
    %2 = vector.broadcast %c1717986918_i32 : i32 to vector<8x768xi32>
    %3 = arith.cmpi uge, %1, %2 : vector<8x768xi32>
    %cst = arith.constant 0.000000e+00 : f32
    %4 = vector.broadcast %cst : f32 to vector<8x768xf32>
    %5 = arith.select %3, %0, %4 : vector<8x768xi1>, vector<8x768xf32>
    %6 = arith.truncf %5 : vector<8x768xf32> to vector<8x768xbf16>
    %c0_3 = arith.constant 0 : index
    %c0_4 = arith.constant 0 : index
    %7 = vector.load %arg4[%c0_3, %c0_4] : memref<768x128xbf16, #tpu.memory_space<vmem>>, vector<768x128xbf16>
    %cst_5 = arith.constant dense<0.000000e+00> : vector<8x128xf32>
    %8 = tpu.matmul %6, %7, %cst_5 {dimension_numbers = #tpu.dot_dimension_numbers<[1], [0], [0], [1], [0, 0, 1, 1], [], []>} : vector<8x768xbf16>, vector<768x128xbf16>, vector<8x128xf32> -> vector<8x128xf32>
    %c0_6 = arith.constant 0 : index
    %c0_7 = arith.constant 0 : index
    %9 = vector.load %arg5[%c0_6, %c0_7] : memref<1x128xf32, #tpu.memory_space<vmem>>, vector<1x128xf32>
    %c0_8 = arith.constant 0 : index
    %c0_9 = arith.constant 0 : index
    %10 = vector.load %arg6[%c0_8, %c0_9] : memref<1x128xf32, #tpu.memory_space<vmem>>, vector<1x128xf32>
    %cst_10 = arith.constant dense<0.000000e+00> : vector<128xf32>
    %11 = vector.multi_reduction <add>, %8, %cst_10 [0] : vector<8x128xf32> to vector<128xf32>
    %12 = vector.shape_cast %11 : vector<128xf32> to vector<1x128xf32>
    %cst_11 = arith.constant 8.000000e+00 : f32
    %13 = vector.broadcast %cst_11 : f32 to vector<1x128xf32>
    %14 = arith.divf %12, %13 : vector<1x128xf32>
    %15 = arith.mulf %8, %8 : vector<8x128xf32>
    %cst_12 = arith.constant dense<0.000000e+00> : vector<128xf32>
    %16 = vector.multi_reduction <add>, %15, %cst_12 [0] : vector<8x128xf32> to vector<128xf32>
    %17 = vector.shape_cast %16 : vector<128xf32> to vector<1x128xf32>
    %cst_13 = arith.constant 8.000000e+00 : f32
    %18 = vector.broadcast %cst_13 : f32 to vector<1x128xf32>
    %19 = arith.divf %17, %18 : vector<1x128xf32>
    %20 = arith.mulf %14, %14 : vector<1x128xf32>
    %21 = arith.subf %19, %20 : vector<1x128xf32>
    %cst_14 = arith.constant 0.000000e+00 : f32
    %22 = vector.broadcast %cst_14 : f32 to vector<1x128xf32>
    %23 = arith.maximumf %21, %22 : vector<1x128xf32>
    %cst_15 = arith.constant 9.99999974E-6 : f32
    %24 = vector.broadcast %cst_15 : f32 to vector<1x128xf32>
    %25 = arith.addf %23, %24 : vector<1x128xf32>
    %26 = math.rsqrt %25 : vector<1x128xf32>
    %27 = arith.mulf %9, %26 : vector<1x128xf32>
    %28 = arith.mulf %14, %27 : vector<1x128xf32>
    %29 = arith.subf %10, %28 : vector<1x128xf32>
    %30 = vector.broadcast %27 : vector<1x128xf32> to vector<8x128xf32>
    %31 = arith.mulf %8, %30 : vector<8x128xf32>
    %32 = vector.broadcast %29 : vector<1x128xf32> to vector<8x128xf32>
    %33 = arith.addf %31, %32 : vector<8x128xf32>
    %cst_16 = arith.constant 0.000000e+00 : f32
    %34 = vector.broadcast %cst_16 : f32 to vector<8x128xf32>
    %35 = arith.maximumf %33, %34 : vector<8x128xf32>
    %c0_17 = arith.constant 0 : index
    %c0_18 = arith.constant 0 : index
    %36 = vector.load %arg2[%c0_17, %c0_18] : memref<8x128xi32, #tpu.memory_space<vmem>>, vector<8x128xi32>
    %c1717986918_i32_19 = arith.constant 1717986918 : i32
    %37 = vector.broadcast %c1717986918_i32_19 : i32 to vector<8x128xi32>
    %38 = arith.cmpi uge, %36, %37 : vector<8x128xi32>
    %cst_20 = arith.constant 0.000000e+00 : f32
    %39 = vector.broadcast %cst_20 : f32 to vector<8x128xf32>
    %40 = arith.select %38, %35, %39 : vector<8x128xi1>, vector<8x128xf32>
    %41 = arith.truncf %40 : vector<8x128xf32> to vector<8x128xbf16>
    %c0_21 = arith.constant 0 : index
    %c0_22 = arith.constant 0 : index
    %42 = vector.load %arg7[%c0_21, %c0_22] : memref<128x128xbf16, #tpu.memory_space<vmem>>, vector<128x128xbf16>
    %cst_23 = arith.constant dense<0.000000e+00> : vector<8x128xf32>
    %43 = tpu.matmul %41, %42, %cst_23 {dimension_numbers = #tpu.dot_dimension_numbers<[1], [0], [0], [1], [0, 0, 1, 1], [], []>} : vector<8x128xbf16>, vector<128x128xbf16>, vector<8x128xf32> -> vector<8x128xf32>
    %c0_24 = arith.constant 0 : index
    %c0_25 = arith.constant 0 : index
    %44 = vector.load %arg8[%c0_24, %c0_25] : memref<1x128xf32, #tpu.memory_space<vmem>>, vector<1x128xf32>
    %c0_26 = arith.constant 0 : index
    %c0_27 = arith.constant 0 : index
    %45 = vector.load %arg9[%c0_26, %c0_27] : memref<1x128xf32, #tpu.memory_space<vmem>>, vector<1x128xf32>
    %cst_28 = arith.constant dense<0.000000e+00> : vector<128xf32>
    %46 = vector.multi_reduction <add>, %43, %cst_28 [0] : vector<8x128xf32> to vector<128xf32>
    %47 = vector.shape_cast %46 : vector<128xf32> to vector<1x128xf32>
    %cst_29 = arith.constant 8.000000e+00 : f32
    %48 = vector.broadcast %cst_29 : f32 to vector<1x128xf32>
    %49 = arith.divf %47, %48 : vector<1x128xf32>
    %50 = arith.mulf %43, %43 : vector<8x128xf32>
    %cst_30 = arith.constant dense<0.000000e+00> : vector<128xf32>
    %51 = vector.multi_reduction <add>, %50, %cst_30 [0] : vector<8x128xf32> to vector<128xf32>
    %52 = vector.shape_cast %51 : vector<128xf32> to vector<1x128xf32>
    %cst_31 = arith.constant 8.000000e+00 : f32
    %53 = vector.broadcast %cst_31 : f32 to vector<1x128xf32>
    %54 = arith.divf %52, %53 : vector<1x128xf32>
    %55 = arith.mulf %49, %49 : vector<1x128xf32>
    %56 = arith.subf %54, %55 : vector<1x128xf32>
    %cst_32 = arith.constant 0.000000e+00 : f32
    %57 = vector.broadcast %cst_32 : f32 to vector<1x128xf32>
    %58 = arith.maximumf %56, %57 : vector<1x128xf32>
    %cst_33 = arith.constant 9.99999974E-6 : f32
    %59 = vector.broadcast %cst_33 : f32 to vector<1x128xf32>
    %60 = arith.addf %58, %59 : vector<1x128xf32>
    %61 = math.rsqrt %60 : vector<1x128xf32>
    %62 = arith.mulf %44, %61 : vector<1x128xf32>
    %63 = arith.mulf %49, %62 : vector<1x128xf32>
    %64 = arith.subf %45, %63 : vector<1x128xf32>
    %65 = vector.broadcast %62 : vector<1x128xf32> to vector<8x128xf32>
    %66 = arith.mulf %43, %65 : vector<8x128xf32>
    %67 = vector.broadcast %64 : vector<1x128xf32> to vector<8x128xf32>
    %68 = arith.addf %66, %67 : vector<8x128xf32>
    %cst_34 = arith.constant 0.000000e+00 : f32
    %69 = vector.broadcast %cst_34 : f32 to vector<8x128xf32>
    %70 = arith.maximumf %68, %69 : vector<8x128xf32>
    %c0_35 = arith.constant 0 : index
    %c0_36 = arith.constant 0 : index
    %71 = vector.load %arg3[%c0_35, %c0_36] : memref<8x128xi32, #tpu.memory_space<vmem>>, vector<8x128xi32>
    %c1717986918_i32_37 = arith.constant 1717986918 : i32
    %72 = vector.broadcast %c1717986918_i32_37 : i32 to vector<8x128xi32>
    %73 = arith.cmpi uge, %71, %72 : vector<8x128xi32>
    %cst_38 = arith.constant 0.000000e+00 : f32
    %74 = vector.broadcast %cst_38 : f32 to vector<8x128xf32>
    %75 = arith.select %73, %70, %74 : vector<8x128xi1>, vector<8x128xf32>
    %76 = arith.truncf %75 : vector<8x128xf32> to vector<8x128xbf16>
    %c0_39 = arith.constant 0 : index
    %c0_40 = arith.constant 0 : index
    %77 = vector.load %arg10[%c0_39, %c0_40] : memref<128x128xbf16, #tpu.memory_space<vmem>>, vector<128x128xbf16>
    %cst_41 = arith.constant dense<0.000000e+00> : vector<8x128xf32>
    %78 = tpu.matmul %76, %77, %cst_41 {dimension_numbers = #tpu.dot_dimension_numbers<[1], [0], [0], [1], [0, 0, 1, 1], [], []>} : vector<8x128xbf16>, vector<128x128xbf16>, vector<8x128xf32> -> vector<8x128xf32>
    %c0_42 = arith.constant 0 : index
    %c0_43 = arith.constant 0 : index
    %79 = vector.load %arg11[%c0_42, %c0_43] : memref<1x128xf32, #tpu.memory_space<vmem>>, vector<1x128xf32>
    %80 = vector.broadcast %79 : vector<1x128xf32> to vector<8x128xf32>
    %81 = arith.addf %78, %80 : vector<8x128xf32>
    %c0_44 = arith.constant 0 : index
    %c0_45 = arith.constant 0 : index
    %82 = vector.load %arg12[%c0_44, %c0_45] : memref<8x128xf32, #tpu.memory_space<vmem>>, vector<8x128xf32>
    tpu.vector_store %arg12[%c0_44, %c0_45], %81 {strides = array<i32>} : memref<8x128xf32, #tpu.memory_space<vmem>>, vector<8x128xf32>,
    return
  }
}

</mosaic_0001>

<llo_original>
// kernel: tinyh_forward.1
$region0: #{tinyh_forward.1}
  #allocation0 [shape = 'u32[]', space=smem, size = 0x4, offset = 0x4, fixed_abs, tag = 'smem constant byte address 0x4 - core index']
  #allocation1 [shape = 'u32[72,128]{1,0:T(1,128)}', space=vmem, size = 0x9000, scoped, tag = 'internal scratch']
  %s0 = inlined_call_operand.hbm [shape: f32[8,768], index: 0, kind: input, shape index: {}]
  %s1 = inlined_call_operand.vmem [shape: u32[8,768], index: 1, kind: input, shape index: {}]
  %s2 = inlined_call_operand.vmem [shape: u32[8,128], index: 2, kind: input, shape index: {}]
  %s3 = inlined_call_operand.vmem [shape: u32[8,128], index: 3, kind: input, shape index: {}]
  %s4 = inlined_call_operand.hbm [shape: bf16[768,128], index: 4, kind: input, shape index: {}]
  %s5 = inlined_call_operand.vmem [shape: f32[1,128], index: 5, kind: input, shape index: {}]
  %s6 = inlined_call_operand.vmem [shape: f32[1,128], index: 6, kind: input, shape index: {}]
  %s7 = inlined_call_operand.vmem [shape: bf16[128,128], index: 7, kind: input, shape index: {}]
  %s8 = inlined_call_operand.vmem [shape: f32[1,128], index: 8, kind: input, shape index: {}]
  %s9 = inlined_call_operand.vmem [shape: f32[1,128], index: 9, kind: input, shape index: {}]
  %s10 = inlined_call_operand.vmem [shape: bf16[128,128], index: 10, kind: input, shape index: {}]
  %s11 = inlined_call_operand.vmem [shape: f32[1,128], index: 11, kind: input, shape index: {}]
  %s12 = inlined_call_operand.hbm [shape: f32[8,128], index: 12, kind: output, shape index: {}]
  %s13 = sld [smem:[#allocation0]]
  $region66: #{tinyh_forward.1} parent=0
    _
  %s15 = ssub.s32 1, %s13
  %s16 = scalar_select 0, %s15, %s13
  $region1: #{tinyh_forward.1} parent=0
    #allocation2 [shape = 'u8[24576]{0}', space=vmem, size = 0x6000, scoped, tag = 'input window, operand 0, single buffered']
    #allocation3 [shape = 's32[1]{0}', space=sflag, size = 0x4, scoped, tag = 'scoped memory for tinyh_forward.1']
    #allocation4 [shape = 's32[1]{0}', space=sflag, size = 0x4, scoped, tag = 'scoped memory for tinyh_forward.1']
    #allocation5 [shape = 'u8[196608]{0}', space=vmem, size = 0x30000, scoped, tag = 'input window, operand 4, single buffered']
    #allocation6 [shape = 's32[1]{0}', space=sflag, size = 0x4, scoped, tag = 'scoped memory for tinyh_forward.1']
    #allocation7 [shape = 'u8[4096]{0}', space=vmem, size = 0x1000, scoped, tag = 'output window, operand 0, single buffered']
    %17 = vsyncpa [#allocation3], 0
    %18 = vsyncpa [#allocation6], 0
    %19 = vsyncpa [#allocation4], 0
    // Predicated region
    $region2: #{tinyh_forward.1} parent=1 // pred_check
      _
    $region3: #{tinyh_forward.1} parent=1 // pred_check_branch
      %21 = sbr.rel (0) target = $region5
    $region4: #{tinyh_forward.1} parent=1 // pred_region
      %23 = vsyncadd [#allocation3], 0
      %s25 = sshll.u32 %s0, 4
      %s26 = int_to_ptr.hbm [resolvable:$true] %s25
      %s27 = sshll.u32 [#allocation2], 4
      %s28 = int_to_ptr.vmem [resolvable:$true] %s27
      %30 = dma.hbm_to_vmem [thread:$0]  %s26, 768, %s28, [#allocation3]
    $region5: #{tinyh_forward.1} parent=1 // pred_fallthru
      _
    // Predicated region
    $region6: #{tinyh_forward.1} parent=1 // pred_check
      _
    $region7: #{tinyh_forward.1} parent=1 // pred_check_branch
      %32 = sbr.rel (0) target = $region9
    $region8: #{tinyh_forward.1} parent=1 // pred_region
      _
    $region9: #{tinyh_forward.1} parent=1 // pred_fallthru
      _
    // Predicated region
    $region10: #{tinyh_forward.1} parent=1 // pred_check
      _
    $region11: #{tinyh_forward.1} parent=1 // pred_check_branch
      %34 = sbr.rel (0) target = $region13
    $region12: #{tinyh_forward.1} parent=1 // pred_region
      _
    $region13: #{tinyh_forward.1} parent=1 // pred_fallthru
      _
    // Predicated region
    $region14: #{tinyh_forward.1} parent=1 // pred_check
      _
    $region15: #{tinyh_forward.1} parent=1 // pred_check_branch
      %36 = sbr.rel (0) target = $region17
    $region16: #{tinyh_forward.1} parent=1 // pred_region
      _
    $region17: #{tinyh_forward.1} parent=1 // pred_fallthru
      _
    // Predicated region
    $region18: #{tinyh_forward.1} parent=1 // pred_check
      _
    $region19: #{tinyh_forward.1} parent=1 // pred_check_branch
      %38 = sbr.rel (0) target = $region21
    $region20: #{tinyh_forward.1} parent=1 // pred_region
      %40 = vsyncadd [#allocation6], 0
      %s41 = sshll.u32 %s4, 4
      %s42 = int_to_ptr.hbm [resolvable:$true] %s41
      %s43 = sshll.u32 [#allocation5], 4
      %s44 = int_to_ptr.vmem [resolvable:$true] %s43
      %49 = dma.hbm_to_vmem [thread:$0]  %s42, 6144, %s44, [#allocation6], 64, 64, 4
    $region21: #{tinyh_forward.1} parent=1 // pred_fallthru
      _
    // Predicated region
    $region22: #{tinyh_forward.1} parent=1 // pred_check
      _
    $region23: #{tinyh_forward.1} parent=1 // pred_check_branch
      %51 = sbr.rel (0) target = $region25
    $region24: #{tinyh_forward.1} parent=1 // pred_region
      _
    $region25: #{tinyh_forward.1} parent=1 // pred_fallthru
      _
    // Predicated region
    $region26: #{tinyh_forward.1} parent=1 // pred_check
      _
    $region27: #{tinyh_forward.1} parent=1 // pred_check_branch
      %53 = sbr.rel (0) target = $region29
    $region28: #{tinyh_forward.1} parent=1 // pred_region
      _
    $region29: #{tinyh_forward.1} parent=1 // pred_fallthru
      _
    // Predicated region
    $region30: #{tinyh_forward.1} parent=1 // pred_check
      _
    $region31: #{tinyh_forward.1} parent=1 // pred_check_branch
      %55 = sbr.rel (0) target = $region33
    $region32: #{tinyh_forward.1} parent=1 // pred_region
      _
    $region33: #{tinyh_forward.1} parent=1 // pred_fallthru
      _
    // Predicated region
    $region34: #{tinyh_forward.1} parent=1 // pred_check
      _
    $region35: #{tinyh_forward.1} parent=1 // pred_check_branch
      %57 = sbr.rel (0) target = $region37
    $region36: #{tinyh_forward.1} parent=1 // pred_region
      _
    $region37: #{tinyh_forward.1} parent=1 // pred_fallthru
      _
    // Predicated region
    $region38: #{tinyh_forward.1} parent=1 // pred_check
      _
    $region39: #{tinyh_forward.1} parent=1 // pred_check_branch
      %59 = sbr.rel (0) target = $region41
    $region40: #{tinyh_forward.1} parent=1 // pred_region
      _
    $region41: #{tinyh_forward.1} parent=1 // pred_fallthru
      _
    // Predicated region
    $region42: #{tinyh_forward.1} parent=1 // pred_check
      _
    $region43: #{tinyh_forward.1} parent=1 // pred_check_branch
      %61 = sbr.rel (0) target = $region45
    $region44: #{tinyh_forward.1} parent=1 // pred_region
      _
    $region45: #{tinyh_forward.1} parent=1 // pred_fallthru
      _
    // Predicated region
    $region46: #{tinyh_forward.1} parent=1 // pred_check
      _
    $region47: #{tinyh_forward.1} parent=1 // pred_check_branch
      %63 = sbr.rel (0) target = $region49
    $region48: #{tinyh_forward.1} parent=1 // pred_region
      _
    $region49: #{tinyh_forward.1} parent=1 // pred_fallthru
      _
    // Predicated region
    $region50: #{tinyh_forward.1} parent=1 // pred_check
      _
    $region51: #{tinyh_forward.1} parent=1 // pred_check_branch
      %65 = sbr.rel (0) target = $region53
    $region52: #{tinyh_forward.1} parent=1 // pred_region
      %67 = dma.done [#allocation3], 768
    $region53: #{tinyh_forward.1} parent=1 // pred_fallthru
      _
    // Predicated region
    $region54: #{tinyh_forward.1} parent=1 // pred_check
      _
    $region55: #{tinyh_forward.1} parent=1 // pred_check_branch
      %69 = sbr.rel (0) target = $region57
    $region56: #{tinyh_forward.1} parent=1 // pred_region
      %71 = dma.done [#allocation6], 6144
    $region57: #{tinyh_forward.1} parent=1 // pred_fallthru
      _
    %v72 = vld [vmem:[#allocation2] sm:$0xff]
    %v73 = vld [vmem:[#allocation2 + $0x8] sm:$0xff]
    %v74 = vld [vmem:[#allocation2 + $0x10] sm:$0xff]
    %v75 = vld [vmem:[#allocation2 + $0x18] sm:$0xff]
    %v76 = vld [vmem:[#allocation2 + $0x20] sm:$0xff]
    %v77 = vld [vmem:[#allocation2 + $0x28] sm:$0xff]
    %v78 = vld [vmem:[%s1] sm:$0xff]
    %v79 = vld [vmem:[%s1 + $0x8] sm:$0xff]
    %v80 = vld [vmem:[%s1 + $0x10] sm:$0xff]
    %v81 = vld [vmem:[%s1 + $0x18] sm:$0xff]
    %v82 = vld [vmem:[%s1 + $0x20] sm:$0xff]
    %v83 = vld [vmem:[%s1 + $0x28] sm:$0xff]
    %v84 = vadd.s32 %v78, 2147483648
    %vm86 = vcmp.ge.s32.totalorder %v84, 3865470566
    %v87 = vadd.s32 %v79, 2147483648
    %vm89 = vcmp.ge.s32.totalorder %v87, 3865470566
    %v90 = vadd.s32 %v80, 2147483648
    %vm92 = vcmp.ge.s32.totalorder %v90, 3865470566
    %v93 = vadd.s32 %v81, 2147483648
    %vm95 = vcmp.ge.s32.totalorder %v93, 3865470566
    %v96 = vadd.s32 %v82, 2147483648
    %vm98 = vcmp.ge.s32.totalorder %v96, 3865470566
    %v99 = vadd.s32 %v83, 2147483648
    %vm101 = vcmp.ge.s32.totalorder %v99, 3865470566
    %v102 = vsel %vm86, %v72, 0.0
    %v103 = vsel %vm89, %v73, 0.0
    %v104 = vsel %vm92, %v74, 0.0
    %v105 = vsel %vm95, %v75, 0.0
    %v106 = vsel %vm98, %v76, 0.0
    %v107 = vsel %vm101, %v77, 0.0
    %v108 = vpack.c.bf16 %v102, %v102
    %v109 = vpack.c.bf16 %v103, %v103
    %v110 = vpack.c.bf16 %v104, %v104
    %v111 = vpack.c.bf16 %v105, %v105
    %v112 = vpack.c.bf16 %v106, %v106
    %v113 = vpack.c.bf16 %v107, %v107
    %v114 = vld [vmem:[#allocation5] sm:$0xf]
    %v115 = vld [vmem:[#allocation5 + $0x4] sm:$0xf]
    %v116 = vld [vmem:[#allocation5 + $0x8] sm:$0xf]
    %v117 = vld [vmem:[#allocation5 + $0xc] sm:$0xf]
    %v118 = vld [vmem:[#allocation5 + $0x10] sm:$0xf]
    %v119 = vld [vmem:[#allocation5 + $0x14] sm:$0xf]
    %v120 = vld [vmem:[#allocation5 + $0x18] sm:$0xf]
    %v121 = vld [vmem:[#allocation5 + $0x1c] sm:$0xf]
    %v122 = vld [vmem:[#allocation5 + $0x20] sm:$0xf]
    %v123 = vld [vmem:[#allocation5 + $0x24] sm:$0xf]
    %v124 = vld [vmem:[#allocation5 + $0x28] sm:$0xf]
    %v125 = vld [vmem:[#allocation5 + $0x2c] sm:$0xf]
    %v126 = vld [vmem:[#allocation5 + $0x30] sm:$0xf]
    %v127 = vld [vmem:[#allocation5 + $0x34] sm:$0xf]
    %v128 = vld [vmem:[#allocation5 + $0x38] sm:$0xf]
    %v129 = vld [vmem:[#allocation5 + $0x3c] sm:$0xf]
    %v130 = vld [vmem:[#allocation5 + $0x40] sm:$0xf]
    %v131 = vld [vmem:[#allocation5 + $0x44] sm:$0xf]
    %v132 = vld [vmem:[#allocation5 + $0x48] sm:$0xf]
    %v133 = vld [vmem:[#allocation5 + $0x4c] sm:$0xf]
    %v134 = vld [vmem:[#allocation5 + $0x50] sm:$0xf]
    %v135 = vld [vmem:[#allocation5 + $0x54] sm:$0xf]
    %v136 = vld [vmem:[#allocation5 + $0x58] sm:$0xf]
    %v137 = vld [vmem:[#allocation5 + $0x5c] sm:$0xf]
    %v138 = vld [vmem:[#allocation5 + $0x60] sm:$0xf]
    %v139 = vld [vmem:[#allocation5 + $0x64] sm:$0xf]
    %v140 = vld [vmem:[#allocation5 + $0x68] sm:$0xf]
    %v141 = vld [vmem:[#allocation5 + $0x6c] sm:$0xf]
    %v142 = vld [vmem:[#allocation5 + $0x70] sm:$0xf]
    %v143 = vld [vmem:[#allocation5 + $0x74] sm:$0xf]
    %v144 = vld [vmem:[#allocation5 + $0x78] sm:$0xf]
    %v145 = vld [vmem:[#allocation5 + $0x7c] sm:$0xf]
    %v146 = vld [vmem:[#allocation5 + $0x80] sm:$0xf]
    %v147 = vld [vmem:[#allocation5 + $0x84] sm:$0xf]
    %v148 = vld [vmem:[#allocation5 + $0x88] sm:$0xf]
    %v149 = vld [vmem:[#allocation5 + $0x8c] sm:$0xf]
    %v150 = vld [vmem:[#allocation5 + $0x90] sm:$0xf]
    %v151 = vld [vmem:[#allocation5 + $0x94] sm:$0xf]
    %v152 = vld [vmem:[#allocation5 + $0x98] sm:$0xf]
    %v153 = vld [vmem:[#allocation5 + $0x9c] sm:$0xf]
    %v154 = vld [vmem:[#allocation5 + $0xa0] sm:$0xf]
    %v155 = vld [vmem:[#allocation5 + $0xa4] sm:$0xf]
    %v156 = vld [vmem:[#allocation5 + $0xa8] sm:$0xf]
    %v157 = vld [vmem:[#allocation5 + $0xac] sm:$0xf]
    %v158 = vld [vmem:[#allocation5 + $0xb0] sm:$0xf]
    %v159 = vld [vmem:[#allocation5 + $0xb4] sm:$0xf]
    %v160 = vld [vmem:[#allocation5 + $0xb8] sm:$0xf]
    %v161 = vld [vmem:[#allocation5 + $0xbc] sm:$0xf]
    %v162 = vld [vmem:[#allocation5 + $0xc0] sm:$0xf]
    %v163 = vld [vmem:[#allocation5 + $0xc4] sm:$0xf]
    %v164 = vld [vmem:[#allocation5 + $0xc8] sm:$0xf]
    %v165 = vld [vmem:[#allocation5 + $0xcc] sm:$0xf]
    %v166 = vld [vmem:[#allocation5 + $0xd0] sm:$0xf]
    %v167 = vld [vmem:[#allocation5 + $0xd4] sm:$0xf]
    %v168 = vld [vmem:[#allocation5 + $0xd8] sm:$0xf]
    %v169 = vld [vmem:[#allocation5 + $0xdc] sm:$0xf]
    %v170 = vld [vmem:[#allocation5 + $0xe0] sm:$0xf]
    %v171 = vld [vmem:[#allocation5 + $0xe4] sm:$0xf]
    %v172 = vld [vmem:[#allocation5 + $0xe8] sm:$0xf]
    %v173 = vld [vmem:[#allocation5 + $0xec] sm:$0xf]
    %v174 = vld [vmem:[#allocation5 + $0xf0] sm:$0xf]
    %v175 = vld [vmem:[#allocation5 + $0xf4] sm:$0xf]
    %v176 = vld [vmem:[#allocation5 + $0xf8] sm:$0xf]
    %v177 = vld [vmem:[#allocation5 + $0xfc] sm:$0xf]
    %v178 = vld [vmem:[#allocation5 + $0x100] sm:$0xf]
    %v179 = vld [vmem:[#allocation5 + $0x104] sm:$0xf]
    %v180 = vld [vmem:[#allocation5 + $0x108] sm:$0xf]
    %v181 = vld [vmem:[#allocation5 + $0x10c] sm:$0xf]
    %v182 = vld [vmem:[#allocation5 + $0x110] sm:$0xf]
    %v183 = vld [vmem:[#allocation5 + $0x114] sm:$0xf]
    %v184 = vld [vmem:[#allocation5 + $0x118] sm:$0xf]
    %v185 = vld [vmem:[#allocation5 + $0x11c] sm:$0xf]
    %v186 = vld [vmem:[#allocation5 + $0x120] sm:$0xf]
    %v187 = vld [vmem:[#allocation5 + $0x124] sm:$0xf]
    %v188 = vld [vmem:[#allocation5 + $0x128] sm:$0xf]
    %v189 = vld [vmem:[#allocation5 + $0x12c] sm:$0xf]
    %v190 = vld [vmem:[#allocation5 + $0x130] sm:$0xf]
    %v191 = vld [vmem:[#allocation5 + $0x134] sm:$0xf]
    %v192 = vld [vmem:[#allocation5 + $0x138] sm:$0xf]
    %v193 = vld [vmem:[#allocation5 + $0x13c] sm:$0xf]
    %v194 = vld [vmem:[#allocation5 + $0x140] sm:$0xf]
    %v195 = vld [vmem:[#allocation5 + $0x144] sm:$0xf]
    %v196 = vld [vmem:[#allocation5 + $0x148] sm:$0xf]
    %v197 = vld [vmem:[#allocation5 + $0x14c] sm:$0xf]
    %v198 = vld [vmem:[#allocation5 + $0x150] sm:$0xf]
    %v199 = vld [vmem:[#allocation5 + $0x154] sm:$0xf]
    %v200 = vld [vmem:[#allocation5 + $0x158] sm:$0xf]
    %v201 = vld [vmem:[#allocation5 + $0x15c] sm:$0xf]
    %v202 = vld [vmem:[#allocation5 + $0x160] sm:$0xf]
    %v203 = vld [vmem:[#allocation5 + $0x164] sm:$0xf]
    %v204 = vld [vmem:[#allocation5 + $0x168] sm:$0xf]
    %v205 = vld [vmem:[#allocation5 + $0x16c] sm:$0xf]
    %v206 = vld [vmem:[#allocation5 + $0x170] sm:$0xf]
    %v207 = vld [vmem:[#allocation5 + $0x174] sm:$0xf]
    %v208 = vld [vmem:[#allocation5 + $0x178] sm:$0xf]
    %v209 = vld [vmem:[#allocation5 + $0x17c] sm:$0xf]
    %v306 = vunpack.c.l.b16 %v114
    %v307 = vunpack.c.l.b16 %v115
    %v308 = vunpack.c.l.b16 %v116
    %v309 = vunpack.c.l.b16 %v117
    %v310 = vunpack.c.l.b16 %v118
    %v311 = vunpack.c.l.b16 %v119
    %v312 = vunpack.c.l.b16 %v120
    %v313 = vunpack.c.l.b16 %v121
    %v314 = vunpack.c.l.b16 %v122
    %v315 = vunpack.c.l.b16 %v123
    %v316 = vunpack.c.l.b16 %v124
    %v317 = vunpack.c.l.b16 %v125
    %v318 = vunpack.c.l.b16 %v126
    %v319 = vunpack.c.l.b16 %v127
    %v320 = vunpack.c.l.b16 %v128
    %v321 = vunpack.c.l.b16 %v129
    %v322 = vunpack.c.l.b16 %v130
    %v323 = vunpack.c.l.b16 %v131
    %v324 = vunpack.c.l.b16 %v132
    %v325 = vunpack.c.l.b16 %v133
    %v326 = vunpack.c.l.b16 %v134
    %v327 = vunpack.c.l.b16 %v135
    %v328 = vunpack.c.l.b16 %v136
    %v329 = vunpack.c.l.b16 %v137
    %v330 = vunpack.c.l.b16 %v138
    %v331 = vunpack.c.l.b16 %v139
    %v332 = vunpack.c.l.b16 %v140
    %v333 = vunpack.c.l.b16 %v141
    %v334 = vunpack.c.l.b16 %v142
    %v335 = vunpack.c.l.b16 %v143
    %v336 = vunpack.c.l.b16 %v144
    %v337 = vunpack.c.l.b16 %v145
    %v338 = vunpack.c.l.b16 %v146
    %v339 = vunpack.c.l.b16 %v147
    %v340 = vunpack.c.l.b16 %v148
    %v341 = vunpack.c.l.b16 %v149
    %v342 = vunpack.c.l.b16 %v150
    %v343 = vunpack.c.l.b16 %v151
    %v344 = vunpack.c.l.b16 %v152
    %v345 = vunpack.c.l.b16 %v153
    %v346 = vunpack.c.l.b16 %v154
    %v347 = vunpack.c.l.b16 %v155
    %v348 = vunpack.c.l.b16 %v156
    %v349 = vunpack.c.l.b16 %v157
    %v350 = vunpack.c.l.b16 %v158
    %v351 = vunpack.c.l.b16 %v159
    %v352 = vunpack.c.l.b16 %v160
    %v353 = vunpack.c.l.b16 %v161
    %v354 = vunpack.c.l.b16 %v162
    %v355 = vunpack.c.l.b16 %v163
    %v356 = vunpack.c.l.b16 %v164
    %v357 = vunpack.c.l.b16 %v165
    %v358 = vunpack.c.l.b16 %v166
    %v359 = vunpack.c.l.b16 %v167
    %v360 = vunpack.c.l.b16 %v168
    %v361 = vunpack.c.l.b16 %v169
    %v362 = vunpack.c.l.b16 %v170
    %v363 = vunpack.c.l.b16 %v171
    %v364 = vunpack.c.l.b16 %v172
    %v365 = vunpack.c.l.b16 %v173
    %v366 = vunpack.c.l.b16 %v174
    %v367 = vunpack.c.l.b16 %v175
    %v368 = vunpack.c.l.b16 %v176
    %v369 = vunpack.c.l.b16 %v177
    %v370 = vunpack.c.l.b16 %v178
    %v371 = vunpack.c.l.b16 %v179
    %v372 = vunpack.c.l.b16 %v180
    %v373 = vunpack.c.l.b16 %v181
    %v374 = vunpack.c.l.b16 %v182
    %v375 = vunpack.c.l.b16 %v183
    %v376 = vunpack.c.l.b16 %v184
    %v377 = vunpack.c.l.b16 %v185
    %v378 = vunpack.c.l.b16 %v186
    %v379 = vunpack.c.l.b16 %v187
    %v380 = vunpack.c.l.b16 %v188
    %v381 = vunpack.c.l.b16 %v189
    %v382 = vunpack.c.l.b16 %v190
    %v383 = vunpack.c.l.b16 %v191
    %v384 = vunpack.c.l.b16 %v192
    %v385 = vunpack.c.l.b16 %v193
    %v386 = vunpack.c.l.b16 %v194
    %v387 = vunpack.c.l.b16 %v195
    %v388 = vunpack.c.l.b16 %v196
    %v389 = vunpack.c.l.b16 %v197
    %v390 = vunpack.c.l.b16 %v198
    %v391 = vunpack.c.l.b16 %v199
    %v392 = vunpack.c.l.b16 %v200
    %v393 = vunpack.c.l.b16 %v201
    %v394 = vunpack.c.l.b16 %v202
    %v395 = vunpack.c.l.b16 %v203
    %v396 = vunpack.c.l.b16 %v204
    %v397 = vunpack.c.l.b16 %v205
    %v398 = vunpack.c.l.b16 %v206
    %v399 = vunpack.c.l.b16 %v207
    %v400 = vunpack.c.l.b16 %v208
    %v401 = vunpack.c.l.b16 %v209
    %v402 = vpack.c.b16 %v307, %v306
    %v403 = vpack.c.b16 %v309, %v308
    %v404 = vpack.c.b16 %v311, %v310
    %v405 = vpack.c.b16 %v313, %v312
    %v406 = vpack.c.b16 %v315, %v314
    %v407 = vpack.c.b16 %v317, %v316
    %v408 = vpack.c.b16 %v319, %v318
    %v409 = vpack.c.b16 %v321, %v320
    %v410 = vpack.c.b16 %v323, %v322
    %v411 = vpack.c.b16 %v325, %v324
    %v412 = vpack.c.b16 %v327, %v326
    %v413 = vpack.c.b16 %v329, %v328
    %v414 = vpack.c.b16 %v331, %v330
    %v415 = vpack.c.b16 %v333, %v332
    %v416 = vpack.c.b16 %v335, %v334
    %v417 = vpack.c.b16 %v337, %v336
    %v418 = vpack.c.b16 %v339, %v338
    %v419 = vpack.c.b16 %v341, %v340
    %v420 = vpack.c.b16 %v343, %v342
    %v421 = vpack.c.b16 %v345, %v344
    %v422 = vpack.c.b16 %v347, %v346
    %v423 = vpack.c.b16 %v349, %v348
    %v424 = vpack.c.b16 %v351, %v350
    %v425 = vpack.c.b16 %v353, %v352
    %v426 = vpack.c.b16 %v355, %v354
    %v427 = vpack.c.b16 %v357, %v356
    %v428 = vpack.c.b16 %v359, %v358
    %v429 = vpack.c.b16 %v361, %v360
    %v430 = vpack.c.b16 %v363, %v362
    %v431 = vpack.c.b16 %v365, %v364
    %v432 = vpack.c.b16 %v367, %v366
    %v433 = vpack.c.b16 %v369, %v368
    %v434 = vpack.c.b16 %v371, %v370
    %v435 = vpack.c.b16 %v373, %v372
    %v436 = vpack.c.b16 %v375, %v374
    %v437 = vpack.c.b16 %v377, %v376
    %v438 = vpack.c.b16 %v379, %v378
    %v439 = vpack.c.b16 %v381, %v380
    %v440 = vpack.c.b16 %v383, %v382
    %v441 = vpack.c.b16 %v385, %v384
    %v442 = vpack.c.b16 %v387, %v386
    %v443 = vpack.c.b16 %v389, %v388
    %v444 = vpack.c.b16 %v391, %v390
    %v445 = vpack.c.b16 %v393, %v392
    %v446 = vpack.c.b16 %v395, %v394
    %v447 = vpack.c.b16 %v397, %v396
    %v448 = vpack.c.b16 %v399, %v398
    %v449 = vpack.c.b16 %v401, %v400
    %498 = vmatpush.bf16.msra.mxu0 %v409
    %499 = vmatpush.bf16.msra.mxu0 %v408
    %500 = vmatpush.bf16.msra.mxu0 %v407
    %501 = vmatpush.bf16.msra.mxu0 %v406
    %502 = vmatpush.bf16.msra.mxu0 %v405
    %503 = vmatpush.bf16.msra.mxu0 %v404
    %504 = vmatpush.bf16.msra.mxu0 %v403
    %505 = vmatpush.bf16.msra.mxu0 %v402
    %506 = vmatmul.bf16.gmra.mxu0 %v108
    %v507 = vpop.f32.mrf.mxu0
    %v508 = vadd.f32 0.0, %v507
    %v509 = vpop.f32.mrf.mxu0
    %510 = vdwg.mxu0
    %511 = vmatpush.bf16.msra.mxu0 %v417
    %512 = vmatpush.bf16.msra.mxu0 %v416
    %513 = vmatpush.bf16.msra.mxu0 %v415
    %514 = vmatpush.bf16.msra.mxu0 %v414
    %515 = vmatpush.bf16.msra.mxu0 %v413
    %516 = vmatpush.bf16.msra.mxu0 %v412
    %517 = vmatpush.bf16.msra.mxu0 %v411
    %518 = vmatpush.bf16.msra.mxu0 %v410
    %519 = vmatmul.bf16.gmra.mxu0 %v109
    %v520 = vpop.f32.mrf.mxu0
    %v521 = vadd.f32 %v508, %v520
    %v522 = vpop.f32.mrf.mxu0
    %523 = vdwg.mxu0
    %524 = vmatpush.bf16.msra.mxu0 %v425
    %525 = vmatpush.bf16.msra.mxu0 %v424
    %526 = vmatpush.bf16.msra.mxu0 %v423
    %527 = vmatpush.bf16.msra.mxu0 %v422
    %528 = vmatpush.bf16.msra.mxu0 %v421
    %529 = vmatpush.bf16.msra.mxu0 %v420
    %530 = vmatpush.bf16.msra.mxu0 %v419
    %531 = vmatpush.bf16.msra.mxu0 %v418
    %532 = vmatmul.bf16.gmra.mxu0 %v110
    %v533 = vpop.f32.mrf.mxu0
    %v534 = vadd.f32 %v521, %v533
    %v535 = vpop.f32.mrf.mxu0
    %536 = vdwg.mxu0
    %537 = vmatpush.bf16.msra.mxu0 %v433
    %538 = vmatpush.bf16.msra.mxu0 %v432
    %539 = vmatpush.bf16.msra.mxu0 %v431
    %540 = vmatpush.bf16.msra.mxu0 %v430
    %541 = vmatpush.bf16.msra.mxu0 %v429
    %542 = vmatpush.bf16.msra.mxu0 %v428
    %543 = vmatpush.bf16.msra.mxu0 %v427
    %544 = vmatpush.bf16.msra.mxu0 %v426
    %545 = vmatmul.bf16.gmra.mxu0 %v111
    %v546 = vpop.f32.mrf.mxu0
    %v547 = vadd.f32 %v534, %v546
    %v548 = vpop.f32.mrf.mxu0
    %549 = vdwg.mxu0
    %550 = vmatpush.bf16.msra.mxu0 %v441
    %551 = vmatpush.bf16.msra.mxu0 %v440
    %552 = vmatpush.bf16.msra.mxu0 %v439
    %553 = vmatpush.bf16.msra.mxu0 %v438
    %554 = vmatpush.bf16.msra.mxu0 %v437
    %555 = vmatpush.bf16.msra.mxu0 %v436
    %556 = vmatpush.bf16.msra.mxu0 %v435
    %557 = vmatpush.bf16.msra.mxu0 %v434
    %558 = vmatmul.bf16.gmra.mxu0 %v112
    %v559 = vpop.f32.mrf.mxu0
    %v560 = vadd.f32 %v547, %v559
    %v561 = vpop.f32.mrf.mxu0
    %562 = vdwg.mxu0
    %563 = vmatpush.bf16.msra.mxu0 %v449
    %564 = vmatpush.bf16.msra.mxu0 %v448
    %565 = vmatpush.bf16.msra.mxu0 %v447
    %566 = vmatpush.bf16.msra.mxu0 %v446
    %567 = vmatpush.bf16.msra.mxu0 %v445
    %568 = vmatpush.bf16.msra.mxu0 %v444
    %569 = vmatpush.bf16.msra.mxu0 %v443
    %570 = vmatpush.bf16.msra.mxu0 %v442
    %571 = vmatmul.bf16.gmra.mxu0 %v113
    %v572 = vpop.f32.mrf.mxu0
    %v573 = vadd.f32 %v560, %v572
    %v574 = vpop.f32.mrf.mxu0
    %575 = vdwg.mxu0
    %v576 = vld [vmem:[%s5] sm:$0x1]
    %v577 = vld [vmem:[%s6] sm:$0x1]
    %v578 = vrot.slane %v573, 4
    %v579 = vadd.f32 %v573, %v578
    %v580 = vrot.slane %v579, 2
    %v581 = vadd.f32 %v579, %v580
    %v582 = vrot.slane %v581, 1
    %v583 = vadd.f32 %v581, %v582
    %v584 = vrcp.pop 8.0
    %v585 = vmul.f32 8.0, %v584
    %v586 = vsub.f32 1.0, %v585
    %v587 = vmul.f32 %v584, %v586
    %v588 = vadd.f32 %v584, %v587
    %vm589 = vweird.f32 %v584
    %v590 = vsel %vm589, %v584, %v588
    %v591 = vmul.f32 %v583, %v590
    %v592 = vmul.f32 %v573, %v573
    %v593 = vrot.slane %v592, 4
    %v594 = vadd.f32 %v592, %v593
    %v595 = vrot.slane %v594, 2
    %v596 = vadd.f32 %v594, %v595
    %v597 = vrot.slane %v596, 1
    %v598 = vadd.f32 %v596, %v597
    %v599 = vmul.f32 %v598, %v590
    %v600 = vmul.f32 %v591, %v591
    %v601 = vsub.f32 %v599, %v600
    %v602 = vmax.f32 %v601, 0.0
    %v603 = vadd.f32 %v602, 1e-05
    %v604 = vrsqrt.pop %v603
    %v605 = vmul.f32 %v604, %v603
    %v606 = vmul.f32 %v605, %v604
    %v607 = vmul.f32 0.5, %v606
    %v608 = vsub.f32 1.5, %v607
    %v609 = vmul.f32 %v604, %v608
    %vm610 = vweird.f32 %v603
    %vm611 = vweird.f32 %v604
    %vm612 = vmor %vm610, %vm611
    %v613 = vsel %vm612, %v604, %v609
    %v614 = vmul.f32 %v576, %v613
    %v615 = vmul.f32 %v591, %v614
    %v616 = vsub.f32 %v577, %v615
    %v618 = vperm.slane %v614, 0
    %v620 = vmul.f32 %v573, %v618
    %v622 = vperm.slane %v616, 0
    %v624 = vadd.f32 %v620, %v622
    %v625 = vmax.f32 %v624, 0.0
    %v626 = vld [vmem:[%s2] sm:$0xff]
    %v627 = vadd.s32 %v626, 2147483648
    %vm629 = vcmp.ge.s32.totalorder %v627, 3865470566
    %v630 = vsel %vm629, %v625, 0.0
    %v631 = vpack.c.bf16 %v630, %v630
    %v632 = vld [vmem:[%s7] sm:$0xf]
    %v633 = vld [vmem:[%s7 + $0x4] sm:$0xf]
    %v634 = vld [vmem:[%s7 + $0x8] sm:$0xf]
    %v635 = vld [vmem:[%s7 + $0xc] sm:$0xf]
    %v636 = vld [vmem:[%s7 + $0x10] sm:$0xf]
    %v637 = vld [vmem:[%s7 + $0x14] sm:$0xf]
    %v638 = vld [vmem:[%s7 + $0x18] sm:$0xf]
    %v639 = vld [vmem:[%s7 + $0x1c] sm:$0xf]
    %v640 = vld [vmem:[%s7 + $0x20] sm:$0xf]
    %v641 = vld [vmem:[%s7 + $0x24] sm:$0xf]
    %v642 = vld [vmem:[%s7 + $0x28] sm:$0xf]
    %v643 = vld [vmem:[%s7 + $0x2c] sm:$0xf]
    %v644 = vld [vmem:[%s7 + $0x30] sm:$0xf]
    %v645 = vld [vmem:[%s7 + $0x34] sm:$0xf]
    %v646 = vld [vmem:[%s7 + $0x38] sm:$0xf]
    %v647 = vld [vmem:[%s7 + $0x3c] sm:$0xf]
    %v664 = vunpack.c.l.b16 %v632
    %v665 = vunpack.c.l.b16 %v633
    %v666 = vunpack.c.l.b16 %v634
    %v667 = vunpack.c.l.b16 %v635
    %v668 = vunpack.c.l.b16 %v636
    %v669 = vunpack.c.l.b16 %v637
    %v670 = vunpack.c.l.b16 %v638
    %v671 = vunpack.c.l.b16 %v639
    %v672 = vunpack.c.l.b16 %v640
    %v673 = vunpack.c.l.b16 %v641
    %v674 = vunpack.c.l.b16 %v642
    %v675 = vunpack.c.l.b16 %v643
    %v676 = vunpack.c.l.b16 %v644
    %v677 = vunpack.c.l.b16 %v645
    %v678 = vunpack.c.l.b16 %v646
    %v679 = vunpack.c.l.b16 %v647
    %v680 = vpack.c.b16 %v665, %v664
    %v681 = vpack.c.b16 %v667, %v666
    %v682 = vpack.c.b16 %v669, %v668
    %v683 = vpack.c.b16 %v671, %v670
    %v684 = vpack.c.b16 %v673, %v672
    %v685 = vpack.c.b16 %v675, %v674
    %v686 = vpack.c.b16 %v677, %v676
    %v687 = vpack.c.b16 %v679, %v678
    %696 = vmatpush.bf16.msra.mxu0 %v687
    %697 = vmatpush.bf16.msra.mxu0 %v686
    %698 = vmatpush.bf16.msra.mxu0 %v685
    %699 = vmatpush.bf16.msra.mxu0 %v684
    %700 = vmatpush.bf16.msra.mxu0 %v683
    %701 = vmatpush.bf16.msra.mxu0 %v682
    %702 = vmatpush.bf16.msra.mxu0 %v681
    %703 = vmatpush.bf16.msra.mxu0 %v680
    %704 = vmatmul.bf16.gmra.mxu0 %v631
    %v705 = vpop.f32.mrf.mxu0
    %v706 = vadd.f32 0.0, %v705
    %v707 = vpop.f32.mrf.mxu0
    %708 = vdwg.mxu0
    %v709 = vld [vmem:[%s8] sm:$0x1]
    %v710 = vld [vmem:[%s9] sm:$0x1]
    %v711 = vrot.slane %v706, 4
    %v712 = vadd.f32 %v706, %v711
    %v713 = vrot.slane %v712, 2
    %v714 = vadd.f32 %v712, %v713
    %v715 = vrot.slane %v714, 1
    %v716 = vadd.f32 %v714, %v715
    %v717 = vmul.f32 %v716, %v590
    %v718 = vmul.f32 %v706, %v706
    %v719 = vrot.slane %v718, 4
    %v720 = vadd.f32 %v718, %v719
    %v721 = vrot.slane %v720, 2
    %v722 = vadd.f32 %v720, %v721
    %v723 = vrot.slane %v722, 1
    %v724 = vadd.f32 %v722, %v723
    %v725 = vmul.f32 %v724, %v590
    %v726 = vmul.f32 %v717, %v717
    %v727 = vsub.f32 %v725, %v726
    %v728 = vmax.f32 %v727, 0.0
    %v729 = vadd.f32 %v728, 1e-05
    %v730 = vrsqrt.pop %v729
    %v731 = vmul.f32 %v730, %v729
    %v732 = vmul.f32 %v731, %v730
    %v733 = vmul.f32 0.5, %v732
    %v734 = vsub.f32 1.5, %v733
    %v735 = vmul.f32 %v730, %v734
    %vm736 = vweird.f32 %v729
    %vm737 = vweird.f32 %v730
    %vm738 = vmor %vm736, %vm737
    %v739 = vsel %vm738, %v730, %v735
    %v740 = vmul.f32 %v709, %v739
    %v741 = vmul.f32 %v717, %v740
    %v742 = vsub.f32 %v710, %v741
    %v744 = vperm.slane %v740, 0
    %v746 = vmul.f32 %v706, %v744
    %v748 = vperm.slane %v742, 0
    %v750 = vadd.f32 %v746, %v748
    %v751 = vmax.f32 %v750, 0.0
    %v752 = vld [vmem:[%s3] sm:$0xff]
    %v753 = vadd.s32 %v752, 2147483648
    %vm755 = vcmp.ge.s32.totalorder %v753, 3865470566
    %v756 = vsel %vm755, %v751, 0.0
    %v757 = vpack.c.bf16 %v756, %v756
    %v758 = vld [vmem:[%s10] sm:$0xf]
    %v759 = vld [vmem:[%s10 + $0x4] sm:$0xf]
    %v760 = vld [vmem:[%s10 + $0x8] sm:$0xf]
    %v761 = vld [vmem:[%s10 + $0xc] sm:$0xf]
    %v762 = vld [vmem:[%s10 + $0x10] sm:$0xf]
    %v763 = vld [vmem:[%s10 + $0x14] sm:$0xf]
    %v764 = vld [vmem:[%s10 + $0x18] sm:$0xf]
    %v765 = vld [vmem:[%s10 + $0x1c] sm:$0xf]
    %v766 = vld [vmem:[%s10 + $0x20] sm:$0xf]
    %v767 = vld [vmem:[%s10 + $0x24] sm:$0xf]
    %v768 = vld [vmem:[%s10 + $0x28] sm:$0xf]
    %v769 = vld [vmem:[%s10 + $0x2c] sm:$0xf]
    %v770 = vld [vmem:[%s10 + $0x30] sm:$0xf]
    %v771 = vld [vmem:[%s10 + $0x34] sm:$0xf]
    %v772 = vld [vmem:[%s10 + $0x38] sm:$0xf]
    %v773 = vld [vmem:[%s10 + $0x3c] sm:$0xf]
    %v774 = vld [vmem:[%s11] sm:$0x1]
    %v776 = vperm.slane %v774, 0
    %v794 = vunpack.c.l.b16 %v758
    %v795 = vunpack.c.l.b16 %v759
    %v796 = vunpack.c.l.b16 %v760
    %v797 = vunpack.c.l.b16 %v761
    %v798 = vunpack.c.l.b16 %v762
    %v799 = vunpack.c.l.b16 %v763
    %v800 = vunpack.c.l.b16 %v764
    %v801 = vunpack.c.l.b16 %v765
    %v802 = vunpack.c.l.b16 %v766
    %v803 = vunpack.c.l.b16 %v767
    %v804 = vunpack.c.l.b16 %v768
    %v805 = vunpack.c.l.b16 %v769
    %v806 = vunpack.c.l.b16 %v770
    %v807 = vunpack.c.l.b16 %v771
    %v808 = vunpack.c.l.b16 %v772
    %v809 = vunpack.c.l.b16 %v773
    %v810 = vpack.c.b16 %v795, %v794
    %v811 = vpack.c.b16 %v797, %v796
    %v812 = vpack.c.b16 %v799, %v798
    %v813 = vpack.c.b16 %v801, %v800
    %v814 = vpack.c.b16 %v803, %v802
    %v815 = vpack.c.b16 %v805, %v804
    %v816 = vpack.c.b16 %v807, %v806
    %v817 = vpack.c.b16 %v809, %v808
    %826 = vmatpush.bf16.msra.mxu0 %v817
    %827 = vmatpush.bf16.msra.mxu0 %v816
    %828 = vmatpush.bf16.msra.mxu0 %v815
    %829 = vmatpush.bf16.msra.mxu0 %v814
    %830 = vmatpush.bf16.msra.mxu0 %v813
    %831 = vmatpush.bf16.msra.mxu0 %v812
    %832 = vmatpush.bf16.msra.mxu0 %v811
    %833 = vmatpush.bf16.msra.mxu0 %v810
    %834 = vmatmul.bf16.gmra.mxu0 %v757
    %v835 = vpop.f32.mrf.mxu0
    %v836 = vadd.f32 %v776, %v835
    %v837 = vpop.f32.mrf.mxu0
    %838 = vdwg.mxu0
    %839 = vst [vmem:[#allocation7] sm:$0xff] %v836
    // Predicated region
    $region58: #{tinyh_forward.1} parent=1 // pred_check
      _
    $region59: #{tinyh_forward.1} parent=1 // pred_check_branch
      %841 = sbr.rel (0) target = $region61
    $region60: #{tinyh_forward.1} parent=1 // pred_region
      %843 = vsyncadd [#allocation4], 0
      %s845 = sshll.u32 [#allocation7], 4
      %s846 = int_to_ptr.vmem [resolvable:$true] %s845
      %s847 = sshll.u32 %s12, 4
      %s848 = int_to_ptr.hbm [resolvable:$true] %s847
      %850 = dma.vmem_to_hbm [thread:$0]  %s846, 128, %s848, [#allocation4]
    $region61: #{tinyh_forward.1} parent=1 // pred_fallthru
      _
    // Predicated region
    $region62: #{tinyh_forward.1} parent=1 // pred_check
      _
    $region63: #{tinyh_forward.1} parent=1 // pred_check_branch
      %852 = sbr.rel (0) target = $region65
    $region64: #{tinyh_forward.1} parent=1 // pred_region
      %854 = dma.done [#allocation4], 128
    $region65: #{tinyh_forward.1} parent=1 // pred_fallthru
      _
    %855 = vsyncpa [#allocation3], 1
    %856 = vsyncpa [#allocation6], 1
    %857 = vsyncpa [#allocation4], 1

</llo_original>
